<compile_context>
chip_gen: v5e
topology: v5e:2x2
jax: 0.10.0
libtpu: 0.0.40
codegen_flags: <defaults>
</compile_context>

<pallas_src>
import functools

import jax
import jax.numpy as jnp
from jax.experimental import pallas as pl
from jax.experimental.pallas import tpu as pltpu


def _loss_stats_kernel(pred_ref, targ_ref, out_ref, acc_ref, *, s_blk):
    """Per-(batch, split, chunk) partial sums accumulated across the chunk axis.

    acc_ref layout (32, 128): rows 0-7 = bce, 8-15 = sigmoid(p)*t, 16-23 = sigmoid(p),
    24-31 = t.  The true scalar values are sum of each 8x128 group (reduced in the
    wrapper), keeping the kernel hot path entirely on the VPU.
    """
    k = pl.program_id(2)

    @pl.when(k == 0)
    def _():
        acc_ref[...] = jnp.zeros_like(acc_ref)

    x = pred_ref[...].astype(jnp.float32)   # (s_blk, 128) logits
    y = targ_ref[...].astype(jnp.float32)   # (s_blk, 128) targets

    # Shared transcendental: e = exp(-|x|) serves both BCE and sigmoid.
    e = jnp.exp(-jnp.abs(x))
    # Stable BCE-with-logits (identical to torch): max(x,0) - x*y + log(1+exp(-|x|))
    bce = jnp.maximum(x, 0.0) - x * y + jnp.log1p(e)
    # Stable sigmoid reusing e (exact divide; no approx reciprocal).
    p = jnp.where(x >= 0.0, 1.0, e) / (1.0 + e)

    if s_blk % 8 == 0:
        r = s_blk // 8

        def red(v):
            # (s_blk,128) -> (r,8,128); sum over leading (untiled) axis = VPU adds.
            return jnp.sum(v.reshape(r, 8, 128), axis=0)
    else:
        # Rare fallback (only when S_blk == S and S is not a multiple of 8):
        # do a full reduce and park the scalar in the [0,0] corner.
        sub = jax.lax.broadcasted_iota(jnp.int32, (8, 128), 0)
        lane = jax.lax.broadcasted_iota(jnp.int32, (8, 128), 1)
        corner = (sub == 0) & (lane == 0)

        def red(v):
            return jnp.where(corner, jnp.sum(v), 0.0)

    acc_ref[0:8, :] += red(bce)
    acc_ref[8:16, :] += red(p * y)
    acc_ref[16:24, :] += red(p)
    acc_ref[24:32, :] += red(y)

    @pl.when(k == pl.num_programs(2) - 1)
    def _():
        out_ref[...] = acc_ref[...]


def _pick_block(S, min_mult):
    """Largest convenient divisor of S for the chunk axis, aligned to sublane packing."""
    for c in (4096, 2048, 1024, 512, 256, 128, 64, 32, 16, 8):
        if c % min_mult == 0 and S % c == 0:
            return c
    # Fall back to any aligned divisor <= 4096.
    hi = min(S, 4096)
    hi -= hi % min_mult
    for c in range(hi, 0, -min_mult):
        if S % c == 0:
            return c
    # TODO(synk): if S is huge and has no aligned divisor, this single full-axis
    # block may exceed the scoped VMEM limit; pad/mask S in that case.
    return S


@functools.partial(jax.jit, static_argnames=("bce_weight", "dice_weight", "smooth"))
def combined_loss(pred, target, *, bce_weight=1.0, dice_weight=1.0, smooth=1e-6):
    B, C, H, W = pred.shape
    F = C * H * W
    assert F % 128 == 0, "flattened per-sample size must be a multiple of 128"
    S = F // 128

    pred_bytes = jnp.dtype(pred.dtype).itemsize
    targ_bytes = jnp.dtype(target.dtype).itemsize
    # Sublane-packing requirement for the narrowest streamed dtype.
    min_mult = {4: 8, 2: 16, 1: 32}.get(min(pred_bytes, targ_bytes), 8)

    S_blk = _pick_block(S, min_mult)
    # If everything fits in one chunk, optionally halve it so v7x can split the
    # work across both TensorCores (keep blocks >= 512 rows for HBM roofline).
    if S // S_blk == 1 and S_blk % (2 * min_mult) == 0 and S_blk // 2 >= 512:
        S_blk //= 2
    K = S // S_blk
    NP = 2 if (K >= 2 and K % 2 == 0) else 1   # extra parallel factor (v7x megacore)
    Kr = K // NP

    p3 = pred.reshape(B, S, 128)
    t3 = target.reshape(B, S, 128)   # keep narrow dtype; cast to f32 inside the kernel

    # Double-buffered input blocks + output + scratch, with headroom.
    vmem_need = 4 * S_blk * 128 * (pred_bytes + targ_bytes) + 8 * 32 * 128 * 4
    vmem_limit = int(min(max(2 * vmem_need, 16 * 1024 * 1024), 32 * 1024 * 1024))

    kern = functools.partial(_loss_stats_kernel, s_blk=S_blk)

    def in_map(b, p, k):
        return (b, p * Kr + k, 0)

    stats = pl.pallas_call(
        kern,
        out_shape=jax.ShapeDtypeStruct((B, NP, 32, 128), jnp.float32),
        grid_spec=pltpu.PrefetchScalarGridSpec(
            num_scalar_prefetch=0,
            grid=(B, NP, Kr),
            in_specs=[
                pl.BlockSpec((pl.Squeezed(), S_blk, 128), in_map),
                pl.BlockSpec((pl.Squeezed(), S_blk, 128), in_map),
            ],
            out_specs=pl.BlockSpec((pl.Squeezed(), pl.Squeezed(), 32, 128),
                                   lambda b, p, k: (b, p, 0, 0)),
            scratch_shapes=[pltpu.VMEM((32, 128), jnp.float32)],
        ),
        compiler_params=pltpu.CompilerParams(
            dimension_semantics=("parallel", "parallel", "arbitrary"),
            vmem_limit_bytes=vmem_limit),
    )(p3, t3)

    # Finish the (tiny) reductions and scalar combination in plain JAX.
    s = stats.reshape(B, NP, 4, 8, 128).sum(axis=(1, 3, 4))   # (B, 4)
    bce_sum_b = s[:, 0]   # total BCE per sample
    inter_b = s[:, 1]     # sum(sigmoid(pred) * target)
    psum_b = s[:, 2]      # sum(sigmoid(pred))
    ysum_b = s[:, 3]      # sum(target)

    # bce.sum(dim=(-2,-1)) -> (B, C); .mean() over B*C == total_sum / (B*C)
    bce = jnp.sum(bce_sum_b) / (B * C)

    dice_coeff = (2.0 * inter_b + smooth) / (psum_b + ysum_b + smooth)
    dice = jnp.mean(1.0 - dice_coeff)

    return bce_weight * bce + dice_weight * dice


def _reference_loss(pred, target, bce_weight=1.0, dice_weight=1.0, smooth=1e-6):
    """Pure-JAX reference mirroring the PyTorch module."""
    x = pred.astype(jnp.float32)
    y = target.astype(jnp.float32)
    bce_el = jnp.maximum(x, 0.0) - x * y + jnp.log1p(jnp.exp(-jnp.abs(x)))
    bce = jnp.mean(jnp.sum(bce_el, axis=(-2, -1)))
    p = jax.nn.sigmoid(x)
    pf = p.reshape(p.shape[0], -1)
    yf = y.reshape(y.shape[0], -1)
    inter = jnp.sum(pf * yf, axis=1)
    union = jnp.sum(pf, axis=1) + jnp.sum(yf, axis=1)
    dice = jnp.mean(1.0 - (2.0 * inter + smooth) / (union + smooth))
    return bce_weight * bce + dice_weight * dice


if __name__ == "__main__":
    key = jax.random.PRNGKey(0)
    kp, kt = jax.random.split(key)
    B, C, H, W = 2, 4, 16, 16
    pred = jax.random.normal(kp, (B, C, H, W), dtype=jnp.float32)
    # Binary {0,1} targets are exact in bf16 -> stream them narrow (fewer HBM bytes).
    target = (jax.random.uniform(kt, (B, C, H, W)) > 0.5).astype(jnp.bfloat16)

    loss = combined_loss(pred, target)
    loss = jax.block_until_ready(loss)

    ref = _reference_loss(pred, target)
    assert jnp.allclose(loss, ref, rtol=1e-5, atol=1e-5), (loss, ref)

    print("KERNEL_OK")
</pallas_src>

<mosaic_0001>
module attributes {stable_mosaic.version = 11 : i64} {
  func.func @_loss_stats_kernel(%arg0: i32, %arg1: i32, %arg2: i32, %arg3: memref<1x8x128xf32, #tpu.memory_space<vmem>>, %arg4: memref<1x8x128xbf16, #tpu.memory_space<vmem>>, %arg5: memref<1x1x32x128xf32, #tpu.memory_space<vmem>>, %arg6: memref<32x128xf32, #tpu.memory_space<vmem>>) attributes {dimension_semantics = [#tpu.dimension_semantics<parallel>, #tpu.dimension_semantics<parallel>, #tpu.dimension_semantics<arbitrary>], iteration_bounds = array<i64: 2, 1, 1>, scalar_prefetch = 0 : i64, scratch_operands = 1 : i64, tpu.core_type = #tpu.core_type<tc>, window_params = [{transform_indices = @transform_0, window_bounds = array<i64: 1, 8, 128>}, {transform_indices = @transform_1, window_bounds = array<i64: 1, 8, 128>}, {transform_indices = @transform_2, window_bounds = array<i64: 1, 1, 32, 128>}]} {
    %c0_i32 = arith.constant 0 : i32
    %0 = arith.cmpi eq, %arg2, %c0_i32 : i32
    %1 = arith.extui %0 : i1 to i32
    %c0_i32_0 = arith.constant 0 : i32
    %2 = arith.cmpi ne, %1, %c0_i32_0 : i32
    scf.if %2 {
      %cst_29 = arith.constant 0.000000e+00 : f32
      %49 = vector.broadcast %cst_29 : f32 to vector<32x128xf32>
      %c0_30 = arith.constant 0 : index
      %c0_31 = arith.constant 0 : index
      %50 = vector.load %arg6[%c0_30, %c0_31] : memref<32x128xf32, #tpu.memory_space<vmem>>, vector<32x128xf32>
      tpu.vector_store %arg6[%c0_30, %c0_31], %49 {strides = array<i32>} : memref<32x128xf32, #tpu.memory_space<vmem>>, vector<32x128xf32>,
    } else {
    }
    %c0 = arith.constant 0 : index
    %c0_1 = arith.constant 0 : index
    %c0_2 = arith.constant 0 : index
    %3 = vector.load %arg3[%c0, %c0_1, %c0_2] : memref<1x8x128xf32, #tpu.memory_space<vmem>>, vector<1x8x128xf32>
    %4 = vector.shape_cast %3 : vector<1x8x128xf32> to vector<8x128xf32>
    %c0_3 = arith.constant 0 : index
    %c0_4 = arith.constant 0 : index
    %c0_5 = arith.constant 0 : index
    %5 = vector.load %arg4[%c0_3, %c0_4, %c0_5] : memref<1x8x128xbf16, #tpu.memory_space<vmem>>, vector<1x8x128xbf16>
    %6 = vector.shape_cast %5 : vector<1x8x128xbf16> to vector<8x128xbf16>
    %7 = arith.extf %6 : vector<8x128xbf16> to vector<8x128xf32>
    %8 = math.absf %4 : vector<8x128xf32>
    %cst = arith.constant 0.000000e+00 : f32
    %9 = vector.broadcast %cst : f32 to vector<8x128xf32>
    %10 = arith.subf %9, %8 : vector<8x128xf32>
    %11 = math.exp %10 : vector<8x128xf32>
    %cst_6 = arith.constant 0.000000e+00 : f32
    %12 = vector.broadcast %cst_6 : f32 to vector<8x128xf32>
    %13 = arith.maximumf %4, %12 : vector<8x128xf32>
    %14 = arith.mulf %4, %7 : vector<8x128xf32>
    %15 = arith.subf %13, %14 : vector<8x128xf32>
    %16 = math.log1p %11 : vector<8x128xf32>
    %17 = arith.addf %15, %16 : vector<8x128xf32>
    %cst_7 = arith.constant 0.000000e+00 : f32
    %18 = vector.broadcast %cst_7 : f32 to vector<8x128xf32>
    %19 = arith.cmpf oge, %4, %18 : vector<8x128xf32>
    %cst_8 = arith.constant 1.000000e+00 : f32
    %20 = vector.broadcast %cst_8 : f32 to vector<8x128xf32>
    %21 = arith.select %19, %20, %11 : vector<8x128xi1>, vector<8x128xf32>
    %cst_9 = arith.constant 1.000000e+00 : f32
    %22 = vector.broadcast %cst_9 : f32 to vector<8x128xf32>
    %23 = arith.addf %22, %11 : vector<8x128xf32>
    %24 = arith.divf %21, %23 : vector<8x128xf32>
    %c0_10 = arith.constant 0 : index
    %c0_11 = arith.constant 0 : index
    %25 = vector.load %arg6[%c0_10, %c0_11] : memref<32x128xf32, #tpu.memory_space<vmem>>, vector<8x128xf32>
    %26 = vector.shape_cast %17 : vector<8x128xf32> to vector<1x8x128xf32>
    %cst_12 = arith.constant dense<0.000000e+00> : vector<8x128xf32>
    %27 = vector.multi_reduction <add>, %26, %cst_12 [0] : vector<1x8x128xf32> to vector<8x128xf32>
    %28 = arith.addf %25, %27 : vector<8x128xf32>
    %c0_13 = arith.constant 0 : index
    %c0_14 = arith.constant 0 : index
    %29 = vector.load %arg6[%c0_13, %c0_14] : memref<32x128xf32, #tpu.memory_space<vmem>>, vector<8x128xf32>
    tpu.vector_store %arg6[%c0_13, %c0_14], %28 {strides = array<i32>} : memref<32x128xf32, #tpu.memory_space<vmem>>, vector<8x128xf32>,
    %c8 = arith.constant 8 : index
    %c0_15 = arith.constant 0 : index
    %30 = vector.load %arg6[%c8, %c0_15] : memref<32x128xf32, #tpu.memory_space<vmem>>, vector<8x128xf32>
    %31 = arith.mulf %24, %7 : vector<8x128xf32>
    %32 = vector.shape_cast %31 : vector<8x128xf32> to vector<1x8x128xf32>
    %cst_16 = arith.constant dense<0.000000e+00> : vector<8x128xf32>
    %33 = vector.multi_reduction <add>, %32, %cst_16 [0] : vector<1x8x128xf32> to vector<8x128xf32>
    %34 = arith.addf %30, %33 : vector<8x128xf32>
    %c8_17 = arith.constant 8 : index
    %c0_18 = arith.constant 0 : index
    %35 = vector.load %arg6[%c8_17, %c0_18] : memref<32x128xf32, #tpu.memory_space<vmem>>, vector<8x128xf32>
    tpu.vector_store %arg6[%c8_17, %c0_18], %34 {strides = array<i32>} : memref<32x128xf32, #tpu.memory_space<vmem>>, vector<8x128xf32>,
    %c16 = arith.constant 16 : index
    %c0_19 = arith.constant 0 : index
    %36 = vector.load %arg6[%c16, %c0_19] : memref<32x128xf32, #tpu.memory_space<vmem>>, vector<8x128xf32>
    %37 = vector.shape_cast %24 : vector<8x128xf32> to vector<1x8x128xf32>
    %cst_20 = arith.constant dense<0.000000e+00> : vector<8x128xf32>
    %38 = vector.multi_reduction <add>, %37, %cst_20 [0] : vector<1x8x128xf32> to vector<8x128xf32>
    %39 = arith.addf %36, %38 : vector<8x128xf32>
    %c16_21 = arith.constant 16 : index
    %c0_22 = arith.constant 0 : index
    %40 = vector.load %arg6[%c16_21, %c0_22] : memref<32x128xf32, #tpu.memory_space<vmem>>, vector<8x128xf32>
    tpu.vector_store %arg6[%c16_21, %c0_22], %39 {strides = array<i32>} : memref<32x128xf32, #tpu.memory_space<vmem>>, vector<8x128xf32>,
    %c24 = arith.constant 24 : index
    %c0_23 = arith.constant 0 : index
    %41 = vector.load %arg6[%c24, %c0_23] : memref<32x128xf32, #tpu.memory_space<vmem>>, vector<8x128xf32>
    %42 = vector.shape_cast %7 : vector<8x128xf32> to vector<1x8x128xf32>
    %cst_24 = arith.constant dense<0.000000e+00> : vector<8x128xf32>
    %43 = vector.multi_reduction <add>, %42, %cst_24 [0] : vector<1x8x128xf32> to vector<8x128xf32>
    %44 = arith.addf %41, %43 : vector<8x128xf32>
    %c24_25 = arith.constant 24 : index
    %c0_26 = arith.constant 0 : index
    %45 = vector.load %arg6[%c24_25, %c0_26] : memref<32x128xf32, #tpu.memory_space<vmem>>, vector<8x128xf32>
    tpu.vector_store %arg6[%c24_25, %c0_26], %44 {strides = array<i32>} : memref<32x128xf32, #tpu.memory_space<vmem>>, vector<8x128xf32>,
    %c0_i32_27 = arith.constant 0 : i32
    %46 = arith.cmpi eq, %arg2, %c0_i32_27 : i32
    %47 = arith.extui %46 : i1 to i32
    %c0_i32_28 = arith.constant 0 : i32
    %48 = arith.cmpi ne, %47, %c0_i32_28 : i32
    scf.if %48 {
      %c0_29 = arith.constant 0 : index
      %c0_30 = arith.constant 0 : index
      %49 = vector.load %arg6[%c0_29, %c0_30] : memref<32x128xf32, #tpu.memory_space<vmem>>, vector<32x128xf32>
      %c0_31 = arith.constant 0 : index
      %c0_32 = arith.constant 0 : index
      %c0_33 = arith.constant 0 : index
      %c0_34 = arith.constant 0 : index
      %50 = vector.load %arg5[%c0_31, %c0_32, %c0_33, %c0_34] : memref<1x1x32x128xf32, #tpu.memory_space<vmem>>, vector<1x1x32x128xf32>
      %51 = vector.shape_cast %50 : vector<1x1x32x128xf32> to vector<32x128xf32>
      %52 = vector.shape_cast %49 : vector<32x128xf32> to vector<1x1x32x128xf32>
      tpu.vector_store %arg5[%c0_31, %c0_32, %c0_33, %c0_34], %52 {strides = array<i32>} : memref<1x1x32x128xf32, #tpu.memory_space<vmem>>, vector<1x1x32x128xf32>,
    } else {
    }
    return
  }
  func.func @transform_0(%arg0: i32, %arg1: i32, %arg2: i32) -> (i32, i32, i32) {
    %c1_i32 = arith.constant 1 : i32
    %0 = arith.muli %arg1, %c1_i32 : i32
    %1 = arith.addi %0, %arg2 : i32
    %c0_i32 = arith.constant 0 : i32
    %c0_i32_0 = arith.constant 0 : i32
    return %arg0, %1, %c0_i32 : i32, i32, i32
  }
  func.func @transform_1(%arg0: i32, %arg1: i32, %arg2: i32) -> (i32, i32, i32) {
    %c1_i32 = arith.constant 1 : i32
    %0 = arith.muli %arg1, %c1_i32 : i32
    %1 = arith.addi %0, %arg2 : i32
    %c0_i32 = arith.constant 0 : i32
    %c0_i32_0 = arith.constant 0 : i32
    return %arg0, %1, %c0_i32 : i32, i32, i32
  }
  func.func @transform_2(%arg0: i32, %arg1: i32, %arg2: i32) -> (i32, i32, i32, i32) {
    %c0_i32 = arith.constant 0 : i32
    %c0_i32_0 = arith.constant 0 : i32
    %c0_i32_1 = arith.constant 0 : i32
    return %arg0, %arg1, %c0_i32, %c0_i32_0 : i32, i32, i32, i32
  }
}

</mosaic_0001>

<llo_original>
// kernel: combined_loss.1
$region0: #{combined_loss.1}
  #allocation0 [shape = 'u32[]', space=smem, size = 0x4, offset = 0x4, fixed_abs, tag = 'smem constant byte address 0x4 - core index']
  #allocation1 [shape = 'u32[72,128]{1,0:T(1,128)}', space=vmem, size = 0x9000, scoped, tag = 'internal scratch']
  #allocation2 [shape = 'f32[32,128]{1,0:T(8,128)}', space=vmem, size = 0x4000, scoped, tag = 'scratch operand']
  %s0 = inlined_call_operand.vmem [shape: f32[2,8,128], index: 0, kind: input, shape index: {}]
  %s1 = inlined_call_operand.vmem [shape: bf16[2,8,128], index: 1, kind: input, shape index: {}]
  %s2 = inlined_call_operand.vmem [shape: f32[2,1,32,128], index: 2, kind: output, shape index: {}]
  %s3 = sld [smem:[#allocation0]]
  $region49: #{combined_loss.1} parent=0
    _
  %s5 = ssub.s32 1, %s3
  %s6 = scalar_select 0, %s5, %s3
  loop: start=0, step=1, limit=4
  $region2: #{combined_loss.1} parent=0 // loop_pre_header
    _
  $region3: #{combined_loss.1} parent=0 // loop_header
    %s8 = sphi 0, %s12
    %p9 = scmp.ge.s32.totalorder %s8, 4
    %s15 = sphi 0, %s34
    %s16 = sphi 0, %s30
    %s17 = sphi 0, %s26
    %s18 = sphi 0, %s15
    %s19 = sphi 0, %s16
    %s20 = sphi 0, %s17
    %s21 = sphi 0, %s18
    %s22 = sphi 0, %s19
    %s23 = sphi 0, %s20
    %s41 = sphi 0, %s43
    %s44 = sphi 0, %s41
    %s45 = sphi 0, %s44
    %s61 = sphi 0, %s45
    %s71 = sphi 0, %s73
    %s74 = sphi 0, %s71
    %s75 = sphi 0, %s74
    %s91 = sphi 0, %s75
    %s99 = sphi 0, %s101
    %s102 = sphi 0, %s99
    %s103 = sphi 0, %s102
    %s119 = sphi 0, %s103
  $region4: #{combined_loss.1} parent=0 // loop_header_branch
    %11 = sbr.rel (%p9) target = $region8
  $region5: #{combined_loss.1} parent=0 // loop_body
    %s13 = ssub.s32 %s8, 1
    %s14 = ssub.s32 %s8, 2
    %s24 = sadd.s32 1, %s17
    %p25 = scmp.ge.s32.totalorder %s24, 1
    %s26 = scalar_select %p25, 0, %s24
    %s27 = sadd.s32 1, %s16
    %s28 = scalar_select %p25, %s27, %s16
    %p29 = scmp.ge.s32.totalorder %s28, 1
    %s30 = scalar_select %p29, 0, %s28
    %s31 = sadd.s32 1, %s15
    %s32 = scalar_select %p29, %s31, %s15
    %p33 = scmp.ge.s32.totalorder %s32, 2
    %s34 = scalar_select %p33, 0, %s32
    %s35 = sadd.s32 %s16, %s17
    %s36 = sadd.s32 %s30, %s26
    %s37 = ssub.s32 %s15, %s34
    %s38 = ssub.s32 %s35, %s36
    %s39 = sor.u32 %s37, %s38
    %p40 = scmp.eq.s32.totalorder %s39, 0
    %s42 = sadd.s32 %s41, 1
    %s43 = scalar_select %p40, %s41, %s42
    %p46 = pneg %p40
    %p47 = scmp.eq.s32.totalorder %s8, 1
    %p48 = por %p46, %p47
    %p49 = scmp.ne.s32.totalorder %s41, %s44
    %p50 = scmp.eq.s32.totalorder %s8, 0
    %p51 = por %p49, %p50
    %p52 = scmp.ne.s32.totalorder %s41, %s44
    %p53 = scmp.eq.s32.totalorder %s13, 1
    %p54 = por %p52, %p53
    %p55 = scmp.ne.s32.totalorder %s44, %s45
    %p56 = scmp.eq.s32.totalorder %s13, 0
    %p57 = por %p55, %p56
    %p58 = scmp.ne.s32.totalorder %s44, %s45
    %p59 = scmp.eq.s32.totalorder %s14, 1
    %p60 = por %p58, %p59
    %p62 = scmp.ne.s32.totalorder %s45, %s61
    %p63 = scmp.eq.s32.totalorder %s14, 0
    %p64 = por %p62, %p63
    %s65 = sadd.s32 %s16, %s17
    %s66 = sadd.s32 %s30, %s26
    %s67 = ssub.s32 %s15, %s34
    %s68 = ssub.s32 %s65, %s66
    %s69 = sor.u32 %s67, %s68
    %p70 = scmp.eq.s32.totalorder %s69, 0
    %s72 = sadd.s32 %s71, 1
    %s73 = scalar_select %p70, %s71, %s72
    %p76 = pneg %p70
    %p77 = scmp.eq.s32.totalorder %s8, 1
    %p78 = por %p76, %p77
    %p79 = scmp.ne.s32.totalorder %s71, %s74
    %p80 = scmp.eq.s32.totalorder %s8, 0
    %p81 = por %p79, %p80
    %p82 = scmp.ne.s32.totalorder %s71, %s74
    %p83 = scmp.eq.s32.totalorder %s13, 1
    %p84 = por %p82, %p83
    %p85 = scmp.ne.s32.totalorder %s74, %s75
    %p86 = scmp.eq.s32.totalorder %s13, 0
    %p87 = por %p85, %p86
    %p88 = scmp.ne.s32.totalorder %s74, %s75
    %p89 = scmp.eq.s32.totalorder %s14, 1
    %p90 = por %p88, %p89
    %p92 = scmp.ne.s32.totalorder %s75, %s91
    %p93 = scmp.eq.s32.totalorder %s14, 0
    %p94 = por %p92, %p93
    %s95 = ssub.s32 %s15, %s34
    %s96 = ssub.s32 %s16, %s30
    %s97 = sor.u32 %s95, %s96
    %p98 = scmp.eq.s32.totalorder %s97, 0
    %s100 = sadd.s32 %s99, 1
    %s101 = scalar_select %p98, %s99, %s100
    %p104 = pneg %p98
    %p105 = scmp.eq.s32.totalorder %s8, 1
    %p106 = por %p104, %p105
    %p107 = scmp.ne.s32.totalorder %s99, %s102
    %p108 = scmp.eq.s32.totalorder %s8, 0
    %p109 = por %p107, %p108
    %p110 = scmp.ne.s32.totalorder %s99, %s102
    %p111 = scmp.eq.s32.totalorder %s13, 1
    %p112 = por %p110, %p111
    %p113 = scmp.ne.s32.totalorder %s102, %s103
    %p114 = scmp.eq.s32.totalorder %s13, 0
    %p115 = por %p113, %p114
    %p116 = scmp.ne.s32.totalorder %s102, %s103
    %p117 = scmp.eq.s32.totalorder %s14, 1
    %p118 = por %p116, %p117
    %p120 = scmp.ne.s32.totalorder %s103, %s119
    %p121 = scmp.eq.s32.totalorder %s14, 0
    %p122 = por %p120, %p121
    %p123 = scmp.le.s32.totalorder 1, %s8
    %p124 = scmp.lt.s32.totalorder %s8, 3
    %p125 = pnand %p123, %p124
    %p126 = pneg %p125
    // Predicated region
    $region9: #{combined_loss.1} parent=5 // pred_check
      _
    $region10: #{combined_loss.1} parent=5 // pred_check_branch
      %128 = sbr.rel (%p125) target = $region12
    $region11: #{combined_loss.1} parent=5 // pred_region
      %s129 = ssub.s32 %s8, 1
    $region12: #{combined_loss.1} parent=5 // pred_fallthru
      _
    %p130 = scmp.lt.s32.totalorder %s8, 2
    // Predicated region
    $region13: #{combined_loss.1} parent=5 // pred_check
      %p131 = pneg %p130
    $region14: #{combined_loss.1} parent=5 // pred_check_branch
      %133 = sbr.rel (%p131) target = $region16
    $region15: #{combined_loss.1} parent=5 // pred_region
      // Predicated region
      $region17: #{combined_loss.1} parent=15 // pred_check
        %p134 = pneg %p51
      $region18: #{combined_loss.1} parent=15 // pred_check_branch
        %136 = sbr.rel (%p134) target = $region20
      $region19: #{combined_loss.1} parent=15 // pred_region
        %s137 = sadd.s32 %s16, %s17
        %p138 = scmp.lt.s32.totalorder %s15, 1
        %s139 = scalar_select %p138, %s15, 1
        %p140 = scmp.lt.s32.totalorder %s137, 0
        %s141 = scalar_select %p140, %s137, 0
        %s142 = sadd.s32 %s141, %s139
        %s143 = smul.addr %s142, 8
        %s144 = scalar_lea.vmem %s0, %s143
        %s145 = sadd.s32 %s16, %s17
      $region20: #{combined_loss.1} parent=15 // pred_fallthru
        _
      // Predicated region
      $region21: #{combined_loss.1} parent=15 // pred_check
        %p146 = pneg %p81
      $region22: #{combined_loss.1} parent=15 // pred_check_branch
        %148 = sbr.rel (%p146) target = $region24
      $region23: #{combined_loss.1} parent=15 // pred_region
        %s149 = sadd.s32 %s16, %s17
        %p150 = scmp.lt.s32.totalorder %s15, 1
        %s151 = scalar_select %p150, %s15, 1
        %p152 = scmp.lt.s32.totalorder %s149, 0
        %s153 = scalar_select %p152, %s149, 0
        %s154 = sadd.s32 %s153, %s151
        %s155 = smul.addr %s154, 4
        %s156 = scalar_lea.vmem %s1, %s155
        %s157 = sadd.s32 %s16, %s17
      $region24: #{combined_loss.1} parent=15 // pred_fallthru
        _
    $region16: #{combined_loss.1} parent=5 // pred_fallthru
      _
    %p158 = scmp.le.s32.totalorder 1, %s8
    %p159 = scmp.lt.s32.totalorder %s8, 3
    %p160 = pnand %p158, %p159
    %p161 = pneg %p160
    // Predicated region
    $region25: #{combined_loss.1} parent=5 // pred_check
      _
    $region26: #{combined_loss.1} parent=5 // pred_check_branch
      %163 = sbr.rel (%p160) target = $region28
    $region27: #{combined_loss.1} parent=5 // pred_region
      %s164 = ssub.s32 %s8, 1
      %s165 = sadd.s32 %s19, %s20
      %p166 = scmp.lt.s32.totalorder %s18, 1
      %s167 = scalar_select %p166, %s18, 1
      %p168 = scmp.lt.s32.totalorder %s165, 0
      %s169 = scalar_select %p168, %s165, 0
      %s170 = sadd.s32 %s169, %s167
      %s171 = smul.addr %s170, 8
      %s172 = scalar_lea.vmem %s0, %s171
      %p173 = pneg %p57
      %p174 = pneg %p54
      %s175 = sadd.s32 %s19, %s20
      %p176 = scmp.lt.s32.totalorder %s18, 1
      %s177 = scalar_select %p176, %s18, 1
      %p178 = scmp.lt.s32.totalorder %s175, 0
      %s179 = scalar_select %p178, %s175, 0
      %s180 = sadd.s32 %s179, %s177
      %s181 = smul.addr %s180, 4
      %s182 = scalar_lea.vmem %s1, %s181
      %p183 = pneg %p87
      %p184 = pneg %p84
      %p185 = pneg %p115
      %p186 = pneg %p112
      %p187 = scmp.lt.s32.totalorder %s18, 1
      %s188 = scalar_select %p187, %s18, 1
      %p189 = scmp.lt.s32.totalorder %s19, 0
      %s190 = scalar_select %p189, %s19, 0
      %s191 = smul.addr %s190, 4
      %s192 = smul.addr %s188, 4
      %s193 = sadd.s32 %s191, %s192
      %s194 = smul.addr %s193, 8
      %s195 = scalar_lea.vmem %s2, %s194
      %s196 = sadd.s32 %s19, %s20
      %p197 = scmp.lt.s32.totalorder %s18, 1
      %s198 = scalar_select %p197, %s18, 1
      %p199 = scmp.lt.s32.totalorder %s196, 0
      %s200 = scalar_select %p199, %s196, 0
      %s201 = sadd.s32 %s200, %s198
      %s202 = smul.addr %s201, 8
      %s203 = scalar_lea.vmem %s0, %s202
      %s204 = sadd.s32 %s19, %s20
      %s205 = sadd.s32 %s19, %s20
      %p206 = scmp.lt.s32.totalorder %s18, 1
      %s207 = scalar_select %p206, %s18, 1
      %p208 = scmp.lt.s32.totalorder %s205, 0
      %s209 = scalar_select %p208, %s205, 0
      %s210 = sadd.s32 %s209, %s207
      %s211 = smul.addr %s210, 4
      %s212 = scalar_lea.vmem %s1, %s211
      %s213 = sadd.s32 %s19, %s20
      %p214 = scmp.lt.s32.totalorder %s18, 1
      %s215 = scalar_select %p214, %s18, 1
      %p216 = scmp.lt.s32.totalorder %s19, 0
      %s217 = scalar_select %p216, %s19, 0
      %s218 = smul.addr %s217, 4
      %s219 = smul.addr %s215, 4
      %s220 = sadd.s32 %s218, %s219
      %s221 = smul.addr %s220, 8
      %s222 = scalar_lea.vmem %s2, %s221
      %p223 = scmp.eq.s32.totalorder %s20, 0
      // Predicated region
      $region29: #{combined_loss.1} parent=27 // pred_check
        %p224 = pneg %p223
      $region30: #{combined_loss.1} parent=27 // pred_check_branch
        %226 = sbr.rel (%p224) target = $region32
      $region31: #{combined_loss.1} parent=27 // pred_region
        %227 = vst [vmem:[#allocation2] sm:$0xff] 0.0
        %228 = vst [vmem:[#allocation2 + $0x8] sm:$0xff] 0.0
        %229 = vst [vmem:[#allocation2 + $0x10] sm:$0xff] 0.0
        %230 = vst [vmem:[#allocation2 + $0x18] sm:$0xff] 0.0
      $region32: #{combined_loss.1} parent=27 // pred_fallthru
        _
      %v231 = vld [vmem:[%s203] sm:$0xff]
      %v232 = vld [vmem:[%s212] sm:$0xf]
      %v233 = vunpack.c.l.bf16 %v232
      %v234 = vand.u32 2147483647, %v231
      %v235 = vsub.f32 0.0, %v234
      %v236 = vmul.f32 %v235, 1.442695
      %v237 = vpow.pop %v236
      %v238 = vmax.f32 %v231, 0.0
      %v239 = vmul.f32 %v231, %v233
      %v240 = vsub.f32 %v238, %v239
      %v241 = vadd.f32 %v237, 1.0
      %v242 = vlog2.pop %v241
      %v243 = vmul.f32 %v242, 0.6931472
      %v244 = vmul.f32 -0.5, %v237
      %v245 = vadd.f32 %v244, 1.0
      %v246 = vmul.f32 %v245, %v237
      %v247 = vand.u32 2147483647, %v237
      %vm248 = vcmp.lt.f32.partialorder %v247, 0.0004427343
      %v249 = vsel %vm248, %v246, %v243
      %v250 = vadd.f32 %v240, %v249
      %vm251 = vcmp.ge.f32.partialorder %v231, 0.0
      %v252 = vsel %vm251, 1.0, %v237
      %v253 = vadd.f32 %v237, 1.0
      %v254 = vrcp.pop %v253
      %v255 = vmul.f32 %v253, %v254
      %v256 = vsub.f32 1.0, %v255
      %v257 = vmul.f32 %v254, %v256
      %v258 = vadd.f32 %v254, %v257
      %vm259 = vweird.f32 %v253
      %vm260 = vweird.f32 %v254
      %vm261 = vmor %vm259, %vm260
      %v262 = vsel %vm261, %v254, %v258
      %v263 = vand.u32 2147483647, %v253
      %vm264 = vcmp.eq.f32.partialorder %v263, 8.507059e+37
      %v265 = vand.u32 %v253, 2147483648
      %v266 = vor.u32 1.1754944e-38, %v265
      %v267 = vsel %vm264, %v266, %v262
      %v268 = vmul.f32 %v252, %v267
      %v269 = vld [vmem:[#allocation2] sm:$0xff]
      %v270 = vadd.f32 %v250, 0.0
      %v271 = vadd.f32 %v269, %v270
      %272 = vst [vmem:[#allocation2] sm:$0xff] %v271
      %v273 = vld [vmem:[#allocation2 + $0x8] sm:$0xff]
      %v274 = vmul.f32 %v268, %v233
      %v275 = vadd.f32 %v274, 0.0
      %v276 = vadd.f32 %v273, %v275
      %277 = vst [vmem:[#allocation2 + $0x8] sm:$0xff] %v276
      %v278 = vld [vmem:[#allocation2 + $0x10] sm:$0xff]
      %v279 = vadd.f32 %v268, 0.0
      %v280 = vadd.f32 %v278, %v279
      %281 = vst [vmem:[#allocation2 + $0x10] sm:$0xff] %v280
      %v282 = vld [vmem:[#allocation2 + $0x18] sm:$0xff]
      %v283 = vadd.f32 %v233, 0.0
      %v284 = vadd.f32 %v282, %v283
      %285 = vst [vmem:[#allocation2 + $0x18] sm:$0xff] %v284
      // Predicated region
      $region33: #{combined_loss.1} parent=27 // pred_check
        %p286 = pneg %p223
      $region34: #{combined_loss.1} parent=27 // pred_check_branch
        %288 = sbr.rel (%p286) target = $region36
      $region35: #{combined_loss.1} parent=27 // pred_region
        %v289 = vld [vmem:[#allocation2] sm:$0xff]
        %v290 = vld [vmem:[#allocation2 + $0x8] sm:$0xff]
        %v291 = vld [vmem:[#allocation2 + $0x10] sm:$0xff]
        %v292 = vld [vmem:[#allocation2 + $0x18] sm:$0xff]
        %293 = vst [vmem:[%s222] sm:$0xff] %v289
        %294 = vst [vmem:[%s222 + $0x8] sm:$0xff] %v290
        %295 = vst [vmem:[%s222 + $0x10] sm:$0xff] %v291
        %296 = vst [vmem:[%s222 + $0x18] sm:$0xff] %v292
      $region36: #{combined_loss.1} parent=27 // pred_fallthru
        _
      %p297 = scmp.lt.s32.totalorder %s18, 1
      %s298 = scalar_select %p297, %s18, 1
      %p299 = scmp.lt.s32.totalorder %s19, 0
      %s300 = scalar_select %p299, %s19, 0
      %s301 = smul.addr %s300, 4
      %s302 = smul.addr %s298, 4
      %s303 = sadd.s32 %s301, %s302
      %s304 = smul.addr %s303, 8
      %s305 = scalar_lea.vmem %s2, %s304
      // Predicated region
      $region37: #{combined_loss.1} parent=27 // pred_check
        %p306 = pneg %p112
      $region38: #{combined_loss.1} parent=27 // pred_check_branch
        %308 = sbr.rel (%p306) target = $region40
      $region39: #{combined_loss.1} parent=27 // pred_region
        _
      $region40: #{combined_loss.1} parent=27 // pred_fallthru
        _
    $region28: #{combined_loss.1} parent=5 // pred_fallthru
      _
    %p309 = scmp.le.s32.totalorder 2, %s8
    // Predicated region
    $region41: #{combined_loss.1} parent=5 // pred_check
      %p310 = pneg %p309
    $region42: #{combined_loss.1} parent=5 // pred_check_branch
      %312 = sbr.rel (%p310) target = $region44
    $region43: #{combined_loss.1} parent=5 // pred_region
      %s313 = ssub.s32 %s8, 2
      // Predicated region
      $region45: #{combined_loss.1} parent=43 // pred_check
        %p314 = pneg %p118
      $region46: #{combined_loss.1} parent=43 // pred_check_branch
        %316 = sbr.rel (%p314) target = $region48
      $region47: #{combined_loss.1} parent=43 // pred_region
        %p317 = scmp.lt.s32.totalorder %s21, 1
        %s318 = scalar_select %p317, %s21, 1
        %p319 = scmp.lt.s32.totalorder %s22, 0
        %s320 = scalar_select %p319, %s22, 0
        %s321 = smul.addr %s320, 4
        %s322 = smul.addr %s318, 4
        %s323 = sadd.s32 %s321, %s322
        %s324 = smul.addr %s323, 8
        %s325 = scalar_lea.vmem %s2, %s324
      $region48: #{combined_loss.1} parent=43 // pred_fallthru
        _
    $region44: #{combined_loss.1} parent=5 // pred_fallthru
      _
  $region6: #{combined_loss.1} parent=0 // loop_footer
    %s12 = sadd.s32 1, %s8
  $region7: #{combined_loss.1} parent=0 // loop_footer_branch
    %7 = sbr.rel target = $region3
  $region8: #{combined_loss.1} parent=0 // loop_exit
    _

</llo_original>
